<compile_context>
chip_gen: v5e
topology: v5e:2x2
jax: 0.10.0
libtpu: 0.0.40
codegen_flags: <defaults>
</compile_context>

<pallas_src>
import functools
import numpy as np
import jax
import jax.numpy as jnp
from jax.experimental import pallas as pl
from jax.experimental.pallas import tpu as pltpu


def psd_mlp_kernel(q_ref, w1_ref, b123_ref, w2_ref, w3_ref, w4m_ref, b4m_ref,
                   lflat_ref):
    # h = tanh(q @ W1 + b1); h = tanh(h @ W2 + b2); h = tanh(h @ W3 + b3)
    h = jnp.tanh(jnp.dot(q_ref[...], w1_ref[...],
                         preferred_element_type=jnp.float32) + b123_ref[0:1, :])
    h = jnp.tanh(jnp.dot(h, w2_ref[...],
                         preferred_element_type=jnp.float32) + b123_ref[1:2, :])
    h = jnp.tanh(jnp.dot(h, w3_ref[...],
                         preferred_element_type=jnp.float32) + b123_ref[2:3, :])
    # Layer 4 with the scatter matrix pre-folded into the weights: this writes
    # the flattened lower-triangular factor L (bs, diag_dim*diag_dim) directly.
    lflat_ref[...] = (jnp.dot(h, w4m_ref[...],
                              preferred_element_type=jnp.float32) + b4m_ref[...])


def make_scatter_matrix(diag_dim):
    """Rows 0..d-1 place the diagonal, rows d.. place the strict lower triangle."""
    d = diag_dim
    off = d * (d - 1) // 2
    M = np.zeros((d + off, d * d), dtype=np.float32)
    for i in range(d):
        M[i, i * d + i] = 1.0
    tril_r, tril_c = np.tril_indices(d, k=-1)
    flat_ind = np.ravel_multi_index((tril_r, tril_c), (d, d))
    for k, fi in enumerate(flat_ind):
        M[d + k, fi] = 1.0
    return jnp.asarray(M)


def prepare_params(params, diag_dim):
    """One-time host-side prep: fold M into layer 4, pad hidden to 128-multiple,
    stack layer-1..3 biases into a single (3, Hp) array."""
    w1, b1, w2, b2, w3, b3, w4, b4 = params
    input_dim, hidden = w1.shape
    d2 = diag_dim * diag_dim

    M = make_scatter_matrix(diag_dim)          # (diag + off_diag, d*d)
    w4m = w4 @ M                               # (hidden, d2) — pure column scatter
    b4m = b4 @ M                               # (1, d2)

    Hp = ((hidden + 127) // 128) * 128         # lane-dense hidden width
    if Hp == hidden:
        w1p, w2p, w3p, w4mp = w1, w2, w3, w4m
        b123 = jnp.concatenate([b1, b2, b3], axis=0)
    else:
        w1p = jnp.zeros((input_dim, Hp), jnp.float32).at[:, :hidden].set(w1)
        w2p = jnp.zeros((Hp, Hp), jnp.float32).at[:hidden, :hidden].set(w2)
        w3p = jnp.zeros((Hp, Hp), jnp.float32).at[:hidden, :hidden].set(w3)
        w4mp = jnp.zeros((Hp, d2), jnp.float32).at[:hidden, :].set(w4m)
        b123 = (jnp.zeros((3, Hp), jnp.float32)
                .at[0, :hidden].set(b1[0])
                .at[1, :hidden].set(b2[0])
                .at[2, :hidden].set(b3[0]))
    return (w1p, b123, w2p, w3p, w4mp, b4m)


@functools.partial(jax.jit, static_argnames=("diag_dim", "block_batch"))
def psd_forward(q, prepped, diag_dim, block_batch=512):
    """PSD.forward for diag_dim > 1 (fused MLP in Pallas, 4x4 L@L^T glue in XLA)."""
    # TODO(synk): diag_dim == 1 branch (3-layer MLP + h*h + 0.1) not implemented.
    w1p, b123, w2p, w3p, w4mp, b4m = prepped
    bs, input_dim = q.shape
    Hp = w1p.shape[1]
    d2 = diag_dim * diag_dim

    # Batch tiling: stream q / L_flat, keep weights resident across grid steps.
    tb = min(bs, block_batch)
    num_blocks = pl.cdiv(bs, tb)
    bs_pad = num_blocks * tb
    if bs_pad != bs:
        q = jnp.pad(q, ((0, bs_pad - bs), (0, 0)))

    const = lambda i: (0, 0)     # constant block index -> weight stays in VMEM
    stream = lambda i: (i, 0)    # batch-streaming blocks

    l_flat = pl.pallas_call(
        psd_mlp_kernel,
        out_shape=jax.ShapeDtypeStruct((bs_pad, d2), jnp.float32),
        grid_spec=pltpu.PrefetchScalarGridSpec(
            num_scalar_prefetch=0,
            grid=(num_blocks,),
            in_specs=[
                pl.BlockSpec((tb, input_dim), stream),   # q
                pl.BlockSpec((input_dim, Hp), const),    # W1 (padded)
                pl.BlockSpec((3, Hp), const),            # b1/b2/b3 stacked
                pl.BlockSpec((Hp, Hp), const),           # W2 (padded)
                pl.BlockSpec((Hp, Hp), const),           # W3 (padded)
                pl.BlockSpec((Hp, d2), const),           # W4 @ M (padded rows)
                pl.BlockSpec((1, d2), const),            # b4 @ M
            ],
            out_specs=pl.BlockSpec((tb, d2), stream),
        ),
        compiler_params=pltpu.CompilerParams(
            dimension_semantics=("parallel",)),          # shardable across TCs (v7x)
    )(q, w1p, b123, w2p, w3p, w4mp, b4m)

    # Glue (fused under the same jit): tiny per-batch 4x4 L @ L^T and the
    # +0.1 bump on D[0,0] / D[1,1], exactly as in the torch code.
    L = l_flat[:bs].reshape(bs, diag_dim, diag_dim)
    D = jnp.einsum('bij,bkj->bik', L, L)
    bump = (jnp.zeros((diag_dim, diag_dim), jnp.float32)
            .at[0, 0].set(0.1).at[1, 1].set(0.1))
    return D + bump[None, :, :]


def init_params(key, input_dim, hidden_dim, diag_dim):
    """Deterministic init mirroring PSD.__init__ (orthogonal weights)."""
    off_diag_dim = diag_dim * (diag_dim - 1) // 2
    out4_dim = diag_dim + off_diag_dim
    ortho = jax.nn.initializers.orthogonal()
    keys = jax.random.split(key, 8)
    # PyTorch Linear weight is (out, in); orthogonal_ applied to that shape.
    # We transpose to (in, out) for the kernel's  x @ W  convention.
    w1 = ortho(keys[0], (hidden_dim, input_dim), jnp.float32).T
    w2 = ortho(keys[1], (hidden_dim, hidden_dim), jnp.float32).T
    w3 = ortho(keys[2], (hidden_dim, hidden_dim), jnp.float32).T
    w4 = ortho(keys[3], (out4_dim, hidden_dim), jnp.float32).T

    def bias(k, fan_in, n):
        bound = 1.0 / np.sqrt(fan_in)
        return jax.random.uniform(k, (1, n), jnp.float32, -bound, bound)

    b1 = bias(keys[4], input_dim, hidden_dim)
    b2 = bias(keys[5], hidden_dim, hidden_dim)
    b3 = bias(keys[6], hidden_dim, hidden_dim)
    b4 = bias(keys[7], hidden_dim, out4_dim)
    return (w1, b1, w2, b2, w3, b3, w4, b4)


if __name__ == "__main__":
    batch, input_dim, hidden_dim, diag_dim = 8, 16, 32, 4

    key = jax.random.PRNGKey(0)
    k_q, k_p = jax.random.split(key)
    q = jax.random.normal(k_q, (batch, input_dim), jnp.float32)
    params = init_params(k_p, input_dim, hidden_dim, diag_dim)

    prepped = prepare_params(params, diag_dim)   # one-time host-side prep
    D = psd_forward(q, prepped, diag_dim)
    D = jax.block_until_ready(D)

    # sanity: pure-JAX reference of the same math (unpadded, unfolded)
    w1, b1, w2, b2, w3, b3, w4, b4 = params
    h = jnp.tanh(q @ w1 + b1)
    h = jnp.tanh(h @ w2 + b2)
    h = jnp.tanh(h @ w3 + b3)
    y = h @ w4 + b4
    diag, off = y[:, :diag_dim], y[:, diag_dim:]
    Lr = jax.vmap(jnp.diag)(diag)
    tril = np.tril_indices(diag_dim, k=-1)
    Lr = Lr.at[:, tril[0], tril[1]].set(off)
    Dr = jnp.einsum('bij,bkj->bik', Lr, Lr)
    Dr = Dr.at[:, 0, 0].add(0.1).at[:, 1, 1].add(0.1)
    np.testing.assert_allclose(np.asarray(D), np.asarray(Dr), rtol=1e-5, atol=1e-5)

    assert D.shape == (batch, diag_dim, diag_dim)
    print("KERNEL_OK")
</pallas_src>

<mosaic_0001>
module attributes {stable_mosaic.version = 11 : i64} {
  func.func @psd_mlp_kernel(%arg0: i32, %arg1: memref<8x16xf32, #tpu.memory_space<vmem>>, %arg2: memref<16x128xf32, #tpu.memory_space<vmem>>, %arg3: memref<3x128xf32, #tpu.memory_space<vmem>>, %arg4: memref<128x128xf32, #tpu.memory_space<vmem>>, %arg5: memref<128x128xf32, #tpu.memory_space<vmem>>, %arg6: memref<128x16xf32, #tpu.memory_space<vmem>>, %arg7: memref<1x16xf32, #tpu.memory_space<vmem>>, %arg8: memref<8x16xf32, #tpu.memory_space<vmem>>) attributes {dimension_semantics = [#tpu.dimension_semantics<parallel>], iteration_bounds = array<i64: 1>, scalar_prefetch = 0 : i64, scratch_operands = 0 : i64, tpu.core_type = #tpu.core_type<tc>, window_params = [{transform_indices = @transform_0, window_bounds = array<i64: 8, 16>}, {pipeline_mode = #tpu.pipeline_mode<synchronous>, transform_indices = @transform_1, window_bounds = array<i64: 16, 128>}, {pipeline_mode = #tpu.pipeline_mode<synchronous>, transform_indices = @transform_2, window_bounds = array<i64: 3, 128>}, {pipeline_mode = #tpu.pipeline_mode<synchronous>, transform_indices = @transform_3, window_bounds = array<i64: 128, 128>}, {pipeline_mode = #tpu.pipeline_mode<synchronous>, transform_indices = @transform_4, window_bounds = array<i64: 128, 128>}, {pipeline_mode = #tpu.pipeline_mode<synchronous>, transform_indices = @transform_5, window_bounds = array<i64: 128, 16>}, {pipeline_mode = #tpu.pipeline_mode<synchronous>, transform_indices = @transform_6, window_bounds = array<i64: 1, 16>}, {transform_indices = @transform_7, window_bounds = array<i64: 8, 16>}]} {
    %c0 = arith.constant 0 : index
    %c0_0 = arith.constant 0 : index
    %0 = vector.load %arg1[%c0, %c0_0] : memref<8x16xf32, #tpu.memory_space<vmem>>, vector<8x16xf32>
    %c0_1 = arith.constant 0 : index
    %c0_2 = arith.constant 0 : index
    %1 = vector.load %arg2[%c0_1, %c0_2] : memref<16x128xf32, #tpu.memory_space<vmem>>, vector<16x128xf32>
    %cst = arith.constant dense<0.000000e+00> : vector<8x128xf32>
    %2 = tpu.matmul %0, %1, %cst {dimension_numbers = #tpu.dot_dimension_numbers<[1], [0], [0], [1], [0, 0, 1, 1], [], []>} : vector<8x16xf32>, vector<16x128xf32>, vector<8x128xf32> -> vector<8x128xf32>
    %c0_3 = arith.constant 0 : index
    %c0_4 = arith.constant 0 : index
    %3 = vector.load %arg3[%c0_3, %c0_4] : memref<3x128xf32, #tpu.memory_space<vmem>>, vector<1x128xf32>
    %4 = vector.broadcast %3 : vector<1x128xf32> to vector<8x128xf32>
    %5 = arith.addf %2, %4 : vector<8x128xf32>
    %6 = math.tanh %5 : vector<8x128xf32>
    %c0_5 = arith.constant 0 : index
    %c0_6 = arith.constant 0 : index
    %7 = vector.load %arg4[%c0_5, %c0_6] : memref<128x128xf32, #tpu.memory_space<vmem>>, vector<128x128xf32>
    %cst_7 = arith.constant dense<0.000000e+00> : vector<8x128xf32>
    %8 = tpu.matmul %6, %7, %cst_7 {dimension_numbers = #tpu.dot_dimension_numbers<[1], [0], [0], [1], [0, 0, 1, 1], [], []>} : vector<8x128xf32>, vector<128x128xf32>, vector<8x128xf32> -> vector<8x128xf32>
    %c1 = arith.constant 1 : index
    %c0_8 = arith.constant 0 : index
    %9 = vector.load %arg3[%c1, %c0_8] : memref<3x128xf32, #tpu.memory_space<vmem>>, vector<1x128xf32>
    %10 = vector.broadcast %9 : vector<1x128xf32> to vector<8x128xf32>
    %11 = arith.addf %8, %10 : vector<8x128xf32>
    %12 = math.tanh %11 : vector<8x128xf32>
    %c0_9 = arith.constant 0 : index
    %c0_10 = arith.constant 0 : index
    %13 = vector.load %arg5[%c0_9, %c0_10] : memref<128x128xf32, #tpu.memory_space<vmem>>, vector<128x128xf32>
    %cst_11 = arith.constant dense<0.000000e+00> : vector<8x128xf32>
    %14 = tpu.matmul %12, %13, %cst_11 {dimension_numbers = #tpu.dot_dimension_numbers<[1], [0], [0], [1], [0, 0, 1, 1], [], []>} : vector<8x128xf32>, vector<128x128xf32>, vector<8x128xf32> -> vector<8x128xf32>
    %c2 = arith.constant 2 : index
    %c0_12 = arith.constant 0 : index
    %15 = vector.load %arg3[%c2, %c0_12] : memref<3x128xf32, #tpu.memory_space<vmem>>, vector<1x128xf32>
    %16 = vector.broadcast %15 : vector<1x128xf32> to vector<8x128xf32>
    %17 = arith.addf %14, %16 : vector<8x128xf32>
    %18 = math.tanh %17 : vector<8x128xf32>
    %c0_13 = arith.constant 0 : index
    %c0_14 = arith.constant 0 : index
    %19 = vector.load %arg6[%c0_13, %c0_14] : memref<128x16xf32, #tpu.memory_space<vmem>>, vector<128x16xf32>
    %cst_15 = arith.constant dense<0.000000e+00> : vector<8x16xf32>
    %20 = tpu.matmul %18, %19, %cst_15 {dimension_numbers = #tpu.dot_dimension_numbers<[1], [0], [0], [1], [0, 0, 1, 1], [], []>} : vector<8x128xf32>, vector<128x16xf32>, vector<8x16xf32> -> vector<8x16xf32>
    %c0_16 = arith.constant 0 : index
    %c0_17 = arith.constant 0 : index
    %21 = vector.load %arg7[%c0_16, %c0_17] : memref<1x16xf32, #tpu.memory_space<vmem>>, vector<1x16xf32>
    %22 = vector.broadcast %21 : vector<1x16xf32> to vector<8x16xf32>
    %23 = arith.addf %20, %22 : vector<8x16xf32>
    %c0_18 = arith.constant 0 : index
    %c0_19 = arith.constant 0 : index
    %24 = vector.load %arg8[%c0_18, %c0_19] : memref<8x16xf32, #tpu.memory_space<vmem>>, vector<8x16xf32>
    tpu.vector_store %arg8[%c0_18, %c0_19], %23 {strides = array<i32>} : memref<8x16xf32, #tpu.memory_space<vmem>>, vector<8x16xf32>,
    return
  }
  func.func @transform_0(%arg0: i32) -> (i32, i32) {
    %c0_i32 = arith.constant 0 : i32
    %c0_i32_0 = arith.constant 0 : i32
    return %arg0, %c0_i32 : i32, i32
  }
  func.func @transform_1(%arg0: i32) -> (i32, i32) {
    %c0_i32 = arith.constant 0 : i32
    %c0_i32_0 = arith.constant 0 : i32
    %c0_i32_1 = arith.constant 0 : i32
    return %c0_i32, %c0_i32_0 : i32, i32
  }
  func.func @transform_2(%arg0: i32) -> (i32, i32) {
    %c0_i32 = arith.constant 0 : i32
    %c0_i32_0 = arith.constant 0 : i32
    %c0_i32_1 = arith.constant 0 : i32
    return %c0_i32, %c0_i32_0 : i32, i32
  }
  func.func @transform_3(%arg0: i32) -> (i32, i32) {
    %c0_i32 = arith.constant 0 : i32
    %c0_i32_0 = arith.constant 0 : i32
    %c0_i32_1 = arith.constant 0 : i32
    return %c0_i32, %c0_i32_0 : i32, i32
  }
  func.func @transform_4(%arg0: i32) -> (i32, i32) {
    %c0_i32 = arith.constant 0 : i32
    %c0_i32_0 = arith.constant 0 : i32
    %c0_i32_1 = arith.constant 0 : i32
    return %c0_i32, %c0_i32_0 : i32, i32
  }
  func.func @transform_5(%arg0: i32) -> (i32, i32) {
    %c0_i32 = arith.constant 0 : i32
    %c0_i32_0 = arith.constant 0 : i32
    %c0_i32_1 = arith.constant 0 : i32
    return %c0_i32, %c0_i32_0 : i32, i32
  }
  func.func @transform_6(%arg0: i32) -> (i32, i32) {
    %c0_i32 = arith.constant 0 : i32
    %c0_i32_0 = arith.constant 0 : i32
    %c0_i32_1 = arith.constant 0 : i32
    return %c0_i32, %c0_i32_0 : i32, i32
  }
  func.func @transform_7(%arg0: i32) -> (i32, i32) {
    %c0_i32 = arith.constant 0 : i32
    %c0_i32_0 = arith.constant 0 : i32
    return %arg0, %c0_i32 : i32, i32
  }
}

</mosaic_0001>

<llo_original>
// kernel: psd_forward.1
$region0: #{psd_forward.1}
  #allocation0 [shape = 'u32[]', space=smem, size = 0x4, offset = 0x4, fixed_abs, tag = 'smem constant byte address 0x4 - core index']
  #allocation1 [shape = 'u32[72,128]{1,0:T(1,128)}', space=vmem, size = 0x9000, scoped, tag = 'internal scratch']
  %s0 = inlined_call_operand.hbm [shape: f32[8,16], index: 0, kind: input, shape index: {}]
  %s1 = inlined_call_operand.vmem [shape: f32[16,128], index: 1, kind: input, shape index: {}]
  %s2 = inlined_call_operand.hbm [shape: f32[3,128], index: 2, kind: input, shape index: {}]
  %s3 = inlined_call_operand.vmem [shape: f32[128,128], index: 3, kind: input, shape index: {}]
  %s4 = inlined_call_operand.hbm [shape: f32[128,128], index: 4, kind: input, shape index: {}]
  %s5 = inlined_call_operand.vmem [shape: f32[128,16], index: 5, kind: input, shape index: {}]
  %s6 = inlined_call_operand.vmem [shape: f32[1,16], index: 6, kind: input, shape index: {}]
  %s7 = inlined_call_operand.vmem [shape: f32[8,16], index: 7, kind: output, shape index: {}]
  %s8 = sld [smem:[#allocation0]]
  $region50: #{psd_forward.1} parent=0
    _
  %s10 = ssub.s32 1, %s8
  %s11 = scalar_select 0, %s10, %s8
  $region1: #{psd_forward.1} parent=0
    #allocation2 [shape = 'u8[4096]{0}', space=vmem, size = 0x1000, scoped, tag = 'input window, operand 0, single buffered']
    #allocation3 [shape = 's32[1]{0}', space=sflag, size = 0x4, scoped, tag = 'scoped memory for psd_forward.1']
    #allocation4 [shape = 'u8[2048]{0}', space=vmem, size = 0x800, scoped, tag = 'input window, operand 2, single buffered']
    #allocation5 [shape = 's32[1]{0}', space=sflag, size = 0x4, scoped, tag = 'scoped memory for psd_forward.1']
    #allocation6 [shape = 'u8[65536]{0}', space=vmem, size = 0x10000, scoped, tag = 'input window, operand 4, single buffered']
    %12 = vsyncpa [#allocation3], 0
    %13 = vsyncpa [#allocation5], 0
    // Predicated region
    $region2: #{psd_forward.1} parent=1 // pred_check
      _
    $region3: #{psd_forward.1} parent=1 // pred_check_branch
      %15 = sbr.rel (0) target = $region5
    $region4: #{psd_forward.1} parent=1 // pred_region
      %17 = vsyncadd [#allocation3], 0
      %s19 = sshll.u32 %s0, 4
      %s20 = int_to_ptr.hbm [resolvable:$true] %s19
      %s21 = sshll.u32 [#allocation2], 4
      %s22 = int_to_ptr.vmem [resolvable:$true] %s21
      %24 = dma.hbm_to_vmem [thread:$0]  %s20, 128, %s22, [#allocation3]
    $region5: #{psd_forward.1} parent=1 // pred_fallthru
      _
    // Predicated region
    $region6: #{psd_forward.1} parent=1 // pred_check
      _
    $region7: #{psd_forward.1} parent=1 // pred_check_branch
      %26 = sbr.rel (0) target = $region9
    $region8: #{psd_forward.1} parent=1 // pred_region
      _
    $region9: #{psd_forward.1} parent=1 // pred_fallthru
      _
    // Predicated region
    $region10: #{psd_forward.1} parent=1 // pred_check
      _
    $region11: #{psd_forward.1} parent=1 // pred_check_branch
      %28 = sbr.rel (0) target = $region13
    $region12: #{psd_forward.1} parent=1 // pred_region
      %30 = vsyncadd [#allocation5], 0
      %s32 = sshll.u32 %s2, 4
      %s33 = int_to_ptr.hbm [resolvable:$true] %s32
      %s34 = sshll.u32 [#allocation4], 4
      %s35 = int_to_ptr.vmem [resolvable:$true] %s34
      %37 = dma.hbm_to_vmem [thread:$0]  %s33, 64, %s35, [#allocation5]
    $region13: #{psd_forward.1} parent=1 // pred_fallthru
      _
    // Predicated region
    $region14: #{psd_forward.1} parent=1 // pred_check
      _
    $region15: #{psd_forward.1} parent=1 // pred_check_branch
      %39 = sbr.rel (0) target = $region17
    $region16: #{psd_forward.1} parent=1 // pred_region
      _
    $region17: #{psd_forward.1} parent=1 // pred_fallthru
      _
    // Predicated region
    $region18: #{psd_forward.1} parent=1 // pred_check
      _
    $region19: #{psd_forward.1} parent=1 // pred_check_branch
      %41 = sbr.rel (0) target = $region21
    $region20: #{psd_forward.1} parent=1 // pred_region
      %43 = vsyncadd [#allocation5], 0
      %s44 = sshll.u32 %s4, 4
      %s45 = int_to_ptr.hbm [resolvable:$true] %s44
      %s46 = sshll.u32 [#allocation6], 4
      %s47 = int_to_ptr.vmem [resolvable:$true] %s46
      %52 = dma.hbm_to_vmem [thread:$0]  %s45, 2048, %s47, [#allocation5], 128, 128, 8
    $region21: #{psd_forward.1} parent=1 // pred_fallthru
      _
    // Predicated region
    $region22: #{psd_forward.1} parent=1 // pred_check
      _
    $region23: #{psd_forward.1} parent=1 // pred_check_branch
      %54 = sbr.rel (0) target = $region25
    $region24: #{psd_forward.1} parent=1 // pred_region
      _
    $region25: #{psd_forward.1} parent=1 // pred_fallthru
      _
    // Predicated region
    $region26: #{psd_forward.1} parent=1 // pred_check
      _
    $region27: #{psd_forward.1} parent=1 // pred_check_branch
      %56 = sbr.rel (0) target = $region29
    $region28: #{psd_forward.1} parent=1 // pred_region
      _
    $region29: #{psd_forward.1} parent=1 // pred_fallthru
      _
    // Predicated region
    $region30: #{psd_forward.1} parent=1 // pred_check
      _
    $region31: #{psd_forward.1} parent=1 // pred_check_branch
      %58 = sbr.rel (0) target = $region33
    $region32: #{psd_forward.1} parent=1 // pred_region
      %60 = dma.done [#allocation3], 128
    $region33: #{psd_forward.1} parent=1 // pred_fallthru
      _
    // Predicated region
    $region34: #{psd_forward.1} parent=1 // pred_check
      _
    $region35: #{psd_forward.1} parent=1 // pred_check_branch
      %62 = sbr.rel (0) target = $region37
    $region36: #{psd_forward.1} parent=1 // pred_region
      %64 = dma.done [#allocation5], 64
    $region37: #{psd_forward.1} parent=1 // pred_fallthru
      _
    // Predicated region
    $region38: #{psd_forward.1} parent=1 // pred_check
      _
    $region39: #{psd_forward.1} parent=1 // pred_check_branch
      %66 = sbr.rel (0) target = $region41
    $region40: #{psd_forward.1} parent=1 // pred_region
      %68 = dma.done [#allocation5], 2048
    $region41: #{psd_forward.1} parent=1 // pred_fallthru
      _
    %v69 = vld [vmem:[#allocation2] sm:$0xff]
    %v70 = vld [vmem:[%s1] sm:$0xff]
    %v71 = vld [vmem:[%s1 + $0x8] sm:$0xff]
    %v72 = vld [vmem:[#allocation4] sm:$0x1]
    %v73 = vperm.slane %v72, 0
    %vm74 = vcmask 130048
    %v76 = vsel %vm74, %v69, 0
    %78 = vmatpush.msra.mxu0 0.0
    %79 = vmatpush.msra.mxu0 0.0
    %80 = vmatpush.msra.mxu0 0.0
    %81 = vmatpush.msra.mxu0 0.0
    %82 = vmatpush.msra.mxu0 0.0
    %83 = vmatpush.msra.mxu0 0.0
    %84 = vmatpush.msra.mxu0 0.0
    %85 = vmatpush.msra.mxu0 0.0
    %86 = vmatpush.msra.mxu0 0.0
    %87 = vmatpush.msra.mxu0 0.0
    %88 = vmatpush.msra.mxu0 0.0
    %89 = vmatpush.msra.mxu0 0.0
    %90 = vmatpush.msra.mxu0 0.0
    %91 = vmatpush.msra.mxu0 0.0
    %92 = vmatpush.msra.mxu0 %v71
    %93 = vmatpush.msra.mxu0 %v70
    %94 = vmatmul.f32.gmra.mxu0 %v76
    %v95 = vpop.f32.mrf.mxu0
    %v96 = vadd.f32 %v73, %v95
    %97 = vdwg.mxu0
    %v98 = vtanh.pop %v96
    %v99 = vld [vmem:[%s3] sm:$0xff]
    %v100 = vld [vmem:[%s3 + $0x8] sm:$0xff]
    %v101 = vld [vmem:[%s3 + $0x10] sm:$0xff]
    %v102 = vld [vmem:[%s3 + $0x18] sm:$0xff]
    %v103 = vld [vmem:[%s3 + $0x20] sm:$0xff]
    %v104 = vld [vmem:[%s3 + $0x28] sm:$0xff]
    %v105 = vld [vmem:[%s3 + $0x30] sm:$0xff]
    %v106 = vld [vmem:[%s3 + $0x38] sm:$0xff]
    %v107 = vld [vmem:[%s3 + $0x40] sm:$0xff]
    %v108 = vld [vmem:[%s3 + $0x48] sm:$0xff]
    %v109 = vld [vmem:[%s3 + $0x50] sm:$0xff]
    %v110 = vld [vmem:[%s3 + $0x58] sm:$0xff]
    %v111 = vld [vmem:[%s3 + $0x60] sm:$0xff]
    %v112 = vld [vmem:[%s3 + $0x68] sm:$0xff]
    %v113 = vld [vmem:[%s3 + $0x70] sm:$0xff]
    %v114 = vld [vmem:[%s3 + $0x78] sm:$0xff]
    %v115 = vld [vmem:[#allocation4 + $0x1] sm:$0x1]
    %v116 = vperm.slane %v115, 0
    %117 = vmatpush.msra.mxu0 %v114
    %118 = vmatpush.msra.mxu0 %v113
    %119 = vmatpush.msra.mxu0 %v112
    %120 = vmatpush.msra.mxu0 %v111
    %121 = vmatpush.msra.mxu0 %v110
    %122 = vmatpush.msra.mxu0 %v109
    %123 = vmatpush.msra.mxu0 %v108
    %124 = vmatpush.msra.mxu0 %v107
    %125 = vmatpush.msra.mxu0 %v106
    %126 = vmatpush.msra.mxu0 %v105
    %127 = vmatpush.msra.mxu0 %v104
    %128 = vmatpush.msra.mxu0 %v103
    %129 = vmatpush.msra.mxu0 %v102
    %130 = vmatpush.msra.mxu0 %v101
    %131 = vmatpush.msra.mxu0 %v100
    %132 = vmatpush.msra.mxu0 %v99
    %133 = vmatmul.f32.gmra.mxu0 %v98
    %v134 = vpop.f32.mrf.mxu0
    %v135 = vadd.f32 %v116, %v134
    %136 = vdwg.mxu0
    %v137 = vtanh.pop %v135
    %v138 = vld [vmem:[#allocation6] sm:$0xff]
    %v139 = vld [vmem:[#allocation6 + $0x8] sm:$0xff]
    %v140 = vld [vmem:[#allocation6 + $0x10] sm:$0xff]
    %v141 = vld [vmem:[#allocation6 + $0x18] sm:$0xff]
    %v142 = vld [vmem:[#allocation6 + $0x20] sm:$0xff]
    %v143 = vld [vmem:[#allocation6 + $0x28] sm:$0xff]
    %v144 = vld [vmem:[#allocation6 + $0x30] sm:$0xff]
    %v145 = vld [vmem:[#allocation6 + $0x38] sm:$0xff]
    %v146 = vld [vmem:[#allocation6 + $0x40] sm:$0xff]
    %v147 = vld [vmem:[#allocation6 + $0x48] sm:$0xff]
    %v148 = vld [vmem:[#allocation6 + $0x50] sm:$0xff]
    %v149 = vld [vmem:[#allocation6 + $0x58] sm:$0xff]
    %v150 = vld [vmem:[#allocation6 + $0x60] sm:$0xff]
    %v151 = vld [vmem:[#allocation6 + $0x68] sm:$0xff]
    %v152 = vld [vmem:[#allocation6 + $0x70] sm:$0xff]
    %v153 = vld [vmem:[#allocation6 + $0x78] sm:$0xff]
    %v154 = vld [vmem:[#allocation4 + $0x2] sm:$0x1]
    %v155 = vperm.slane %v154, 0
    %156 = vmatpush.msra.mxu0 %v153
    %157 = vmatpush.msra.mxu0 %v152
    %158 = vmatpush.msra.mxu0 %v151
    %159 = vmatpush.msra.mxu0 %v150
    %160 = vmatpush.msra.mxu0 %v149
    %161 = vmatpush.msra.mxu0 %v148
    %162 = vmatpush.msra.mxu0 %v147
    %163 = vmatpush.msra.mxu0 %v146
    %164 = vmatpush.msra.mxu0 %v145
    %165 = vmatpush.msra.mxu0 %v144
    %166 = vmatpush.msra.mxu0 %v143
    %167 = vmatpush.msra.mxu0 %v142
    %168 = vmatpush.msra.mxu0 %v141
    %169 = vmatpush.msra.mxu0 %v140
    %170 = vmatpush.msra.mxu0 %v139
    %171 = vmatpush.msra.mxu0 %v138
    %172 = vmatmul.f32.gmra.mxu0 %v137
    %v173 = vpop.f32.mrf.mxu0
    %v174 = vadd.f32 %v155, %v173
    %175 = vdwg.mxu0
    %v176 = vtanh.pop %v174
    %v177 = vld [vmem:[%s5] sm:$0xff]
    %v178 = vld [vmem:[%s5 + $0x8] sm:$0xff]
    %v179 = vld [vmem:[%s5 + $0x10] sm:$0xff]
    %v180 = vld [vmem:[%s5 + $0x18] sm:$0xff]
    %v181 = vld [vmem:[%s5 + $0x20] sm:$0xff]
    %v182 = vld [vmem:[%s5 + $0x28] sm:$0xff]
    %v183 = vld [vmem:[%s5 + $0x30] sm:$0xff]
    %v184 = vld [vmem:[%s5 + $0x38] sm:$0xff]
    %v185 = vld [vmem:[%s5 + $0x40] sm:$0xff]
    %v186 = vld [vmem:[%s5 + $0x48] sm:$0xff]
    %v187 = vld [vmem:[%s5 + $0x50] sm:$0xff]
    %v188 = vld [vmem:[%s5 + $0x58] sm:$0xff]
    %v189 = vld [vmem:[%s5 + $0x60] sm:$0xff]
    %v190 = vld [vmem:[%s5 + $0x68] sm:$0xff]
    %v191 = vld [vmem:[%s5 + $0x70] sm:$0xff]
    %v192 = vld [vmem:[%s5 + $0x78] sm:$0xff]
    %v193 = vld [vmem:[%s6] sm:$0x1]
    %v195 = vperm.slane %v193, 0
    %197 = vmatpush.msra.mxu0 %v192
    %198 = vmatpush.msra.mxu0 %v191
    %199 = vmatpush.msra.mxu0 %v190
    %200 = vmatpush.msra.mxu0 %v189
    %201 = vmatpush.msra.mxu0 %v188
    %202 = vmatpush.msra.mxu0 %v187
    %203 = vmatpush.msra.mxu0 %v186
    %204 = vmatpush.msra.mxu0 %v185
    %205 = vmatpush.msra.mxu0 %v184
    %206 = vmatpush.msra.mxu0 %v183
    %207 = vmatpush.msra.mxu0 %v182
    %208 = vmatpush.msra.mxu0 %v181
    %209 = vmatpush.msra.mxu0 %v180
    %210 = vmatpush.msra.mxu0 %v179
    %211 = vmatpush.msra.mxu0 %v178
    %212 = vmatpush.msra.mxu0 %v177
    %213 = vmatmul.f32.gmra.mxu0 %v176
    %v214 = vpop.f32.mrf.mxu0
    %v215 = vadd.f32 %v195, %v214
    %216 = vdwg.mxu0
    %217 = vst.msk [vmem:[%s7] sm:$0xff] %vm74, %v215
    // Predicated region
    $region42: #{psd_forward.1} parent=1 // pred_check
      _
    $region43: #{psd_forward.1} parent=1 // pred_check_branch
      %219 = sbr.rel (0) target = $region45
    $region44: #{psd_forward.1} parent=1 // pred_region
      _
    $region45: #{psd_forward.1} parent=1 // pred_fallthru
      _
    // Predicated region
    $region46: #{psd_forward.1} parent=1 // pred_check
      _
    $region47: #{psd_forward.1} parent=1 // pred_check_branch
      %221 = sbr.rel (0) target = $region49
    $region48: #{psd_forward.1} parent=1 // pred_region
      _
    $region49: #{psd_forward.1} parent=1 // pred_fallthru
      _
    %222 = vsyncpa [#allocation3], 1
    %223 = vsyncpa [#allocation5], 1

</llo_original>
